<compile_context>
chip_gen: v5e
topology: v5e:2x2
jax: 0.10.0
libtpu: 0.0.40
codegen_flags: <defaults>
</compile_context>

<pallas_src>
import functools

import jax
import jax.numpy as jnp
from jax.experimental import pallas as pl
from jax.experimental.pallas import tpu as pltpu


def mlp_decoder_kernel(x_ref, w1_ref, b1_ref, w2_ref, b2_ref, w3_ref, b3_ref,
                       o_ref):
    # Matmul input dtype follows the weights (f32 by default for bit-parity,
    # bf16 if use_bf16_matmul); accumulation is always f32.
    mm_dtype = w1_ref.dtype
    x = x_ref[...].astype(mm_dtype)
    # fc1 + ReLU
    h1 = jnp.dot(x, w1_ref[...], preferred_element_type=jnp.float32) + b1_ref[...]
    h1 = jnp.maximum(h1, 0.0)
    # fc2 + ReLU
    h2 = jnp.dot(h1.astype(mm_dtype), w2_ref[...],
                 preferred_element_type=jnp.float32) + b2_ref[...]
    h2 = jnp.maximum(h2, 0.0)
    # fc3 (no activation), lane-dense full-width (128) store
    o_ref[...] = (jnp.dot(h2.astype(mm_dtype), w3_ref[...],
                          preferred_element_type=jnp.float32)
                  + b3_ref[...]).astype(o_ref.dtype)


def _block_diag(w, g):
    """(fin, fout) -> (g*fin, g*fout) block-diagonal with w on the diagonal."""
    fin, fout = w.shape
    eye = jnp.eye(g, dtype=w.dtype)
    return (eye[:, None, :, None] * w[None, :, None, :]).reshape(g * fin, g * fout)


def mlp_decoder(x, params, seq_len, input_size, *, group=4,
                max_block_rows=8192, use_bf16_matmul=False,
                out_dtype=jnp.float32):
    """x: (B, categorical_dim) f32 -> (B, seq_len, input_size) out_dtype."""
    w1, b1, w2, b2, w3, b3 = params
    B, cat = x.shape
    hid = w1.shape[1]
    out_dim = seq_len * input_size
    assert w3.shape[1] == out_dim
    # Lane-density guarantee: the widened output row must be full 128-lane
    # multiples so the store is an unmasked vst (the whole point of `group`).
    assert (group * out_dim) % 128 == 0, (group, out_dim)

    # Pad B only to the sublane-alignment granularity (8 rows of the widened
    # layout = 8*group batch rows), not to a fixed large tile.
    row_align = 8 * group
    b_pad = pl.cdiv(B, row_align) * row_align
    if b_pad <= max_block_rows:
        block_rows = b_pad                      # single grid step
    else:
        # Large batches: big tiles (output tile ~1 MiB f32 at 8192 rows) keep
        # per-step overhead amortized and VMEM well under budget on v5e-v7x.
        block_rows = max_block_rows
        b_pad = pl.cdiv(B, block_rows) * block_rows
    tm_w = block_rows // group                  # widened rows per grid step
    if b_pad != B:
        x = jnp.pad(x, ((0, b_pad - B), (0, 0)))

    # Lane-dense presentation: (b_pad, cat) -> (b_pad/group, group*cat) is a
    # free row-major reshape of the same bytes.
    x_w = x.reshape(b_pad // group, group * cat)

    # Group-way block-diagonal weights + tiled biases (weights bf16 only if
    # reduced precision is explicitly requested).
    w_dtype = jnp.bfloat16 if use_bf16_matmul else jnp.float32
    w1d = _block_diag(w1, group).astype(w_dtype)
    w2d = _block_diag(w2, group).astype(w_dtype)
    w3d = _block_diag(w3, group).astype(w_dtype)
    b1t = jnp.tile(b1.reshape(1, hid), (1, group)).astype(jnp.float32)
    b2t = jnp.tile(b2.reshape(1, hid), (1, group)).astype(jnp.float32)
    b3t = jnp.tile(b3.reshape(1, out_dim), (1, group)).astype(jnp.float32)

    resident = lambda i: (0, 0)   # weights/biases: same block every step
    wbytes = 2 if use_bf16_matmul else 4
    flops = 2 * b_pad * group * (cat * hid + hid * hid + hid * out_dim)
    bytes_accessed = (x_w.size * 4
                      + b_pad * out_dim * jnp.dtype(out_dtype).itemsize
                      + (w1d.size + w2d.size + w3d.size) * wbytes
                      + (b1t.size + b2t.size + b3t.size) * 4)

    out_w = pl.pallas_call(
        mlp_decoder_kernel,
        out_shape=jax.ShapeDtypeStruct((b_pad // group, group * out_dim),
                                       out_dtype),
        grid=(b_pad // block_rows,),
        in_specs=[
            pl.BlockSpec((tm_w, group * cat), lambda i: (i, 0)),
            pl.BlockSpec(w1d.shape, resident),
            pl.BlockSpec(b1t.shape, resident),
            pl.BlockSpec(w2d.shape, resident),
            pl.BlockSpec(b2t.shape, resident),
            pl.BlockSpec(w3d.shape, resident),
            pl.BlockSpec(b3t.shape, resident),
        ],
        out_specs=pl.BlockSpec((tm_w, group * out_dim), lambda i: (i, 0)),
        compiler_params=pltpu.CompilerParams(
            dimension_semantics=("parallel",)),
        cost_estimate=pl.CostEstimate(flops=flops, transcendentals=0,
                                      bytes_accessed=bytes_accessed),
    )(x_w, w1d, b1t, w2d, b2t, w3d, b3t)

    # (b_pad/group, group*out_dim) -> (b_pad, out_dim): free row-major reshape.
    out = out_w.reshape(b_pad, out_dim)[:B]
    return out.reshape(-1, seq_len, input_size)


def init_params(key, categorical_dim, hidden_size, seq_len, input_size):
    """Deterministic init mimicking nn.Linear's default U(-1/sqrt(fan_in), +)."""
    def linear(key, fan_in, fan_out):
        kw, kb = jax.random.split(key)
        bound = 1.0 / jnp.sqrt(fan_in)
        w = jax.random.uniform(kw, (fan_in, fan_out), jnp.float32,
                               minval=-bound, maxval=bound)
        b = jax.random.uniform(kb, (1, fan_out), jnp.float32,
                               minval=-bound, maxval=bound)
        return w, b

    k1, k2, k3 = jax.random.split(key, 3)
    w1, b1 = linear(k1, categorical_dim, hidden_size)
    w2, b2 = linear(k2, hidden_size, hidden_size)
    w3, b3 = linear(k3, hidden_size, seq_len * input_size)
    return (w1, b1, w2, b2, w3, b3)


def mlp_decoder_ref(x, params, seq_len, input_size):
    w1, b1, w2, b2, w3, b3 = params
    hp = jax.lax.Precision.HIGHEST
    h1 = jnp.maximum(jnp.dot(x, w1, precision=hp) + b1, 0.0)
    h2 = jnp.maximum(jnp.dot(h1, w2, precision=hp) + b2, 0.0)
    out = jnp.dot(h2, w3, precision=hp) + b3
    return out.reshape(-1, seq_len, input_size)


if __name__ == "__main__":
    # hparams: CATEGORICAL_DIM=4, SEQ_LEN=8, HIDDEN_DIM=32, IN_DIM=4
    categorical_dim, seq_len, hidden_size, input_size = 4, 8, 32, 4
    # Non-multiple-of-32 batch: padded only to 288 rows, single grid step.
    batch = 257

    key = jax.random.PRNGKey(0)
    kx, kp = jax.random.split(key)
    x = jax.random.normal(kx, (batch, categorical_dim), jnp.float32)
    params = init_params(kp, categorical_dim, hidden_size, seq_len, input_size)

    fwd = jax.jit(functools.partial(mlp_decoder, seq_len=seq_len,
                                    input_size=input_size))
    out = jax.block_until_ready(fwd(x, params))

    ref = mlp_decoder_ref(x, params, seq_len, input_size)
    assert out.shape == (batch, seq_len, input_size)
    # f32 matmuls with f32 accumulation: tight tolerance vs the f32 reference.
    max_err = float(jnp.max(jnp.abs(out - ref)))
    scale = float(jnp.max(jnp.abs(ref)))
    assert max_err <= 5e-3 * max(scale, 1.0), (max_err, scale)

    print("KERNEL_OK")
</pallas_src>

<mosaic_0001>
module attributes {stable_mosaic.version = 11 : i64} {
  func.func @mlp_decoder_kernel(%arg0: i32, %arg1: memref<72x16xf32, #tpu.memory_space<vmem>>, %arg2: memref<16x128xf32, #tpu.memory_space<vmem>>, %arg3: memref<1x128xf32, #tpu.memory_space<vmem>>, %arg4: memref<128x128xf32, #tpu.memory_space<vmem>>, %arg5: memref<1x128xf32, #tpu.memory_space<vmem>>, %arg6: memref<128x128xf32, #tpu.memory_space<vmem>>, %arg7: memref<1x128xf32, #tpu.memory_space<vmem>>, %arg8: memref<72x128xf32, #tpu.memory_space<vmem>>) attributes {dimension_semantics = [#tpu.dimension_semantics<parallel>], iteration_bounds = array<i64: 1>, scalar_prefetch = 0 : i64, scratch_operands = 0 : i64, tpu.core_type = #tpu.core_type<tc>, window_params = [{transform_indices = @transform_0, window_bounds = array<i64: 72, 16>}, {pipeline_mode = #tpu.pipeline_mode<synchronous>, transform_indices = @transform_1, window_bounds = array<i64: 16, 128>}, {pipeline_mode = #tpu.pipeline_mode<synchronous>, transform_indices = @transform_2, window_bounds = array<i64: 1, 128>}, {pipeline_mode = #tpu.pipeline_mode<synchronous>, transform_indices = @transform_3, window_bounds = array<i64: 128, 128>}, {pipeline_mode = #tpu.pipeline_mode<synchronous>, transform_indices = @transform_4, window_bounds = array<i64: 1, 128>}, {pipeline_mode = #tpu.pipeline_mode<synchronous>, transform_indices = @transform_5, window_bounds = array<i64: 128, 128>}, {pipeline_mode = #tpu.pipeline_mode<synchronous>, transform_indices = @transform_6, window_bounds = array<i64: 1, 128>}, {transform_indices = @transform_7, window_bounds = array<i64: 72, 128>}]} {
    %c0 = arith.constant 0 : index
    %c0_0 = arith.constant 0 : index
    %0 = vector.load %arg1[%c0, %c0_0] : memref<72x16xf32, #tpu.memory_space<vmem>>, vector<72x16xf32>
    %c0_1 = arith.constant 0 : index
    %c0_2 = arith.constant 0 : index
    %1 = vector.load %arg2[%c0_1, %c0_2] : memref<16x128xf32, #tpu.memory_space<vmem>>, vector<16x128xf32>
    %cst = arith.constant dense<0.000000e+00> : vector<72x128xf32>
    %2 = tpu.matmul %0, %1, %cst {dimension_numbers = #tpu.dot_dimension_numbers<[1], [0], [0], [1], [0, 0, 1, 1], [], []>} : vector<72x16xf32>, vector<16x128xf32>, vector<72x128xf32> -> vector<72x128xf32>
    %c0_3 = arith.constant 0 : index
    %c0_4 = arith.constant 0 : index
    %3 = vector.load %arg3[%c0_3, %c0_4] : memref<1x128xf32, #tpu.memory_space<vmem>>, vector<1x128xf32>
    %4 = vector.broadcast %3 : vector<1x128xf32> to vector<72x128xf32>
    %5 = arith.addf %2, %4 : vector<72x128xf32>
    %cst_5 = arith.constant 0.000000e+00 : f32
    %6 = vector.broadcast %cst_5 : f32 to vector<72x128xf32>
    %7 = arith.maximumf %5, %6 : vector<72x128xf32>
    %c0_6 = arith.constant 0 : index
    %c0_7 = arith.constant 0 : index
    %8 = vector.load %arg4[%c0_6, %c0_7] : memref<128x128xf32, #tpu.memory_space<vmem>>, vector<128x128xf32>
    %cst_8 = arith.constant dense<0.000000e+00> : vector<72x128xf32>
    %9 = tpu.matmul %7, %8, %cst_8 {dimension_numbers = #tpu.dot_dimension_numbers<[1], [0], [0], [1], [0, 0, 1, 1], [], []>} : vector<72x128xf32>, vector<128x128xf32>, vector<72x128xf32> -> vector<72x128xf32>
    %c0_9 = arith.constant 0 : index
    %c0_10 = arith.constant 0 : index
    %10 = vector.load %arg5[%c0_9, %c0_10] : memref<1x128xf32, #tpu.memory_space<vmem>>, vector<1x128xf32>
    %11 = vector.broadcast %10 : vector<1x128xf32> to vector<72x128xf32>
    %12 = arith.addf %9, %11 : vector<72x128xf32>
    %cst_11 = arith.constant 0.000000e+00 : f32
    %13 = vector.broadcast %cst_11 : f32 to vector<72x128xf32>
    %14 = arith.maximumf %12, %13 : vector<72x128xf32>
    %c0_12 = arith.constant 0 : index
    %c0_13 = arith.constant 0 : index
    %15 = vector.load %arg6[%c0_12, %c0_13] : memref<128x128xf32, #tpu.memory_space<vmem>>, vector<128x128xf32>
    %cst_14 = arith.constant dense<0.000000e+00> : vector<72x128xf32>
    %16 = tpu.matmul %14, %15, %cst_14 {dimension_numbers = #tpu.dot_dimension_numbers<[1], [0], [0], [1], [0, 0, 1, 1], [], []>} : vector<72x128xf32>, vector<128x128xf32>, vector<72x128xf32> -> vector<72x128xf32>
    %c0_15 = arith.constant 0 : index
    %c0_16 = arith.constant 0 : index
    %17 = vector.load %arg7[%c0_15, %c0_16] : memref<1x128xf32, #tpu.memory_space<vmem>>, vector<1x128xf32>
    %18 = vector.broadcast %17 : vector<1x128xf32> to vector<72x128xf32>
    %19 = arith.addf %16, %18 : vector<72x128xf32>
    %c0_17 = arith.constant 0 : index
    %c0_18 = arith.constant 0 : index
    %20 = vector.load %arg8[%c0_17, %c0_18] : memref<72x128xf32, #tpu.memory_space<vmem>>, vector<72x128xf32>
    tpu.vector_store %arg8[%c0_17, %c0_18], %19 {strides = array<i32>} : memref<72x128xf32, #tpu.memory_space<vmem>>, vector<72x128xf32>,
    return
  }
  func.func @transform_0(%arg0: i32) -> (i32, i32) {
    %c0_i32 = arith.constant 0 : i32
    %c0_i32_0 = arith.constant 0 : i32
    return %arg0, %c0_i32 : i32, i32
  }
  func.func @transform_1(%arg0: i32) -> (i32, i32) {
    %c0_i32 = arith.constant 0 : i32
    %c0_i32_0 = arith.constant 0 : i32
    %c0_i32_1 = arith.constant 0 : i32
    return %c0_i32, %c0_i32_0 : i32, i32
  }
  func.func @transform_2(%arg0: i32) -> (i32, i32) {
    %c0_i32 = arith.constant 0 : i32
    %c0_i32_0 = arith.constant 0 : i32
    %c0_i32_1 = arith.constant 0 : i32
    return %c0_i32, %c0_i32_0 : i32, i32
  }
  func.func @transform_3(%arg0: i32) -> (i32, i32) {
    %c0_i32 = arith.constant 0 : i32
    %c0_i32_0 = arith.constant 0 : i32
    %c0_i32_1 = arith.constant 0 : i32
    return %c0_i32, %c0_i32_0 : i32, i32
  }
  func.func @transform_4(%arg0: i32) -> (i32, i32) {
    %c0_i32 = arith.constant 0 : i32
    %c0_i32_0 = arith.constant 0 : i32
    %c0_i32_1 = arith.constant 0 : i32
    return %c0_i32, %c0_i32_0 : i32, i32
  }
  func.func @transform_5(%arg0: i32) -> (i32, i32) {
    %c0_i32 = arith.constant 0 : i32
    %c0_i32_0 = arith.constant 0 : i32
    %c0_i32_1 = arith.constant 0 : i32
    return %c0_i32, %c0_i32_0 : i32, i32
  }
  func.func @transform_6(%arg0: i32) -> (i32, i32) {
    %c0_i32 = arith.constant 0 : i32
    %c0_i32_0 = arith.constant 0 : i32
    %c0_i32_1 = arith.constant 0 : i32
    return %c0_i32, %c0_i32_0 : i32, i32
  }
  func.func @transform_7(%arg0: i32) -> (i32, i32) {
    %c0_i32 = arith.constant 0 : i32
    %c0_i32_0 = arith.constant 0 : i32
    return %arg0, %c0_i32 : i32, i32
  }
}

</mosaic_0001>

<llo_original>
// kernel: mlp_decoder.1
$region0: #{mlp_decoder.1}
  #allocation0 [shape = 'u32[]', space=smem, size = 0x4, offset = 0x4, fixed_abs, tag = 'smem constant byte address 0x4 - core index']
  #allocation1 [shape = 'u32[72,128]{1,0:T(1,128)}', space=vmem, size = 0x9000, scoped, tag = 'internal scratch']
  %s0 = inlined_call_operand.vmem [shape: f32[72,16], index: 0, kind: input, shape index: {}]
  %s1 = inlined_call_operand.vmem [shape: f32[16,128], index: 1, kind: input, shape index: {}]
  %s2 = inlined_call_operand.vmem [shape: f32[1,128], index: 2, kind: input, shape index: {}]
  %s3 = inlined_call_operand.vmem [shape: f32[128,128], index: 3, kind: input, shape index: {}]
  %s4 = inlined_call_operand.vmem [shape: f32[1,128], index: 4, kind: input, shape index: {}]
  %s5 = inlined_call_operand.vmem [shape: f32[128,128], index: 5, kind: input, shape index: {}]
  %s6 = inlined_call_operand.vmem [shape: f32[1,128], index: 6, kind: input, shape index: {}]
  %s7 = inlined_call_operand.vmem [shape: f32[72,128], index: 7, kind: output, shape index: {}]
  %s8 = sld [smem:[#allocation0]]
  $region38: #{mlp_decoder.1} parent=0
    _
  %s10 = ssub.s32 1, %s8
  %s11 = scalar_select 0, %s10, %s8
  // Predicated region
  $region2: #{mlp_decoder.1} parent=0 // pred_check
    _
  $region3: #{mlp_decoder.1} parent=0 // pred_check_branch
    %13 = sbr.rel (0) target = $region5
  $region4: #{mlp_decoder.1} parent=0 // pred_region
    _
  $region5: #{mlp_decoder.1} parent=0 // pred_fallthru
    _
  // Predicated region
  $region6: #{mlp_decoder.1} parent=0 // pred_check
    _
  $region7: #{mlp_decoder.1} parent=0 // pred_check_branch
    %15 = sbr.rel (0) target = $region9
  $region8: #{mlp_decoder.1} parent=0 // pred_region
    _
  $region9: #{mlp_decoder.1} parent=0 // pred_fallthru
    _
  // Predicated region
  $region10: #{mlp_decoder.1} parent=0 // pred_check
    _
  $region11: #{mlp_decoder.1} parent=0 // pred_check_branch
    %17 = sbr.rel (0) target = $region13
  $region12: #{mlp_decoder.1} parent=0 // pred_region
    _
  $region13: #{mlp_decoder.1} parent=0 // pred_fallthru
    _
  // Predicated region
  $region14: #{mlp_decoder.1} parent=0 // pred_check
    _
  $region15: #{mlp_decoder.1} parent=0 // pred_check_branch
    %19 = sbr.rel (0) target = $region17
  $region16: #{mlp_decoder.1} parent=0 // pred_region
    _
  $region17: #{mlp_decoder.1} parent=0 // pred_fallthru
    _
  // Predicated region
  $region18: #{mlp_decoder.1} parent=0 // pred_check
    _
  $region19: #{mlp_decoder.1} parent=0 // pred_check_branch
    %21 = sbr.rel (0) target = $region21
  $region20: #{mlp_decoder.1} parent=0 // pred_region
    _
  $region21: #{mlp_decoder.1} parent=0 // pred_fallthru
    _
  // Predicated region
  $region22: #{mlp_decoder.1} parent=0 // pred_check
    _
  $region23: #{mlp_decoder.1} parent=0 // pred_check_branch
    %23 = sbr.rel (0) target = $region25
  $region24: #{mlp_decoder.1} parent=0 // pred_region
    _
  $region25: #{mlp_decoder.1} parent=0 // pred_fallthru
    _
  // Predicated region
  $region26: #{mlp_decoder.1} parent=0 // pred_check
    _
  $region27: #{mlp_decoder.1} parent=0 // pred_check_branch
    %25 = sbr.rel (0) target = $region29
  $region28: #{mlp_decoder.1} parent=0 // pred_region
    _
  $region29: #{mlp_decoder.1} parent=0 // pred_fallthru
    _
  %v26 = vld [vmem:[%s0] sm:$0xff]
  %v27 = vld [vmem:[%s0 + $0x8] sm:$0xff]
  %v28 = vld [vmem:[%s0 + $0x10] sm:$0xff]
  %v29 = vld [vmem:[%s0 + $0x18] sm:$0xff]
  %v30 = vld [vmem:[%s0 + $0x20] sm:$0xff]
  %v31 = vld [vmem:[%s0 + $0x28] sm:$0xff]
  %v32 = vld [vmem:[%s0 + $0x30] sm:$0xff]
  %v33 = vld [vmem:[%s0 + $0x38] sm:$0xff]
  %v34 = vld [vmem:[%s0 + $0x40] sm:$0xff]
  %v35 = vld [vmem:[%s1] sm:$0xff]
  %v36 = vld [vmem:[%s1 + $0x8] sm:$0xff]
  %v37 = vld [vmem:[%s2] sm:$0x1]
  %v39 = vperm.slane %v37, 0
  %vm41 = vcmask 130048
  %v43 = vsel %vm41, %v26, 0
  %v46 = vsel %vm41, %v27, 0
  %v49 = vsel %vm41, %v28, 0
  %v52 = vsel %vm41, %v29, 0
  %v55 = vsel %vm41, %v30, 0
  %v58 = vsel %vm41, %v31, 0
  %v61 = vsel %vm41, %v32, 0
  %v64 = vsel %vm41, %v33, 0
  %v67 = vsel %vm41, %v34, 0
  %69 = vmatpush.msra.mxu0 0.0
  %70 = vmatpush.msra.mxu0 0.0
  %71 = vmatpush.msra.mxu0 0.0
  %72 = vmatpush.msra.mxu0 0.0
  %73 = vmatpush.msra.mxu0 0.0
  %74 = vmatpush.msra.mxu0 0.0
  %75 = vmatpush.msra.mxu0 0.0
  %76 = vmatpush.msra.mxu0 0.0
  %77 = vmatpush.msra.mxu0 0.0
  %78 = vmatpush.msra.mxu0 0.0
  %79 = vmatpush.msra.mxu0 0.0
  %80 = vmatpush.msra.mxu0 0.0
  %81 = vmatpush.msra.mxu0 0.0
  %82 = vmatpush.msra.mxu0 0.0
  %83 = vmatpush.msra.mxu0 %v36
  %84 = vmatpush.msra.mxu0 %v35
  %85 = vmatmul.f32.gmra.mxu0 %v43
  %v86 = vpop.f32.mrf.mxu0
  %v87 = vadd.f32 %v39, %v86
  %88 = vmatmul.f32.gmra.mxu0 %v46
  %v89 = vpop.f32.mrf.mxu0
  %v90 = vadd.f32 %v39, %v89
  %91 = vmatmul.f32.gmra.mxu0 %v49
  %v92 = vpop.f32.mrf.mxu0
  %v93 = vadd.f32 %v39, %v92
  %94 = vmatmul.f32.gmra.mxu0 %v52
  %v95 = vpop.f32.mrf.mxu0
  %v96 = vadd.f32 %v39, %v95
  %97 = vmatmul.f32.gmra.mxu0 %v55
  %v98 = vpop.f32.mrf.mxu0
  %v99 = vadd.f32 %v39, %v98
  %100 = vmatmul.f32.gmra.mxu0 %v58
  %v101 = vpop.f32.mrf.mxu0
  %v102 = vadd.f32 %v39, %v101
  %103 = vmatmul.f32.gmra.mxu0 %v61
  %v104 = vpop.f32.mrf.mxu0
  %v105 = vadd.f32 %v39, %v104
  %106 = vmatmul.f32.gmra.mxu0 %v64
  %v107 = vpop.f32.mrf.mxu0
  %v108 = vadd.f32 %v39, %v107
  %109 = vmatmul.f32.gmra.mxu0 %v67
  %v110 = vpop.f32.mrf.mxu0
  %v111 = vadd.f32 %v39, %v110
  %112 = vdwg.mxu0
  %v113 = vmax.f32 %v87, 0.0
  %v114 = vmax.f32 %v90, 0.0
  %v115 = vmax.f32 %v93, 0.0
  %v116 = vmax.f32 %v96, 0.0
  %v117 = vmax.f32 %v99, 0.0
  %v118 = vmax.f32 %v102, 0.0
  %v119 = vmax.f32 %v105, 0.0
  %v120 = vmax.f32 %v108, 0.0
  %v121 = vmax.f32 %v111, 0.0
  %v122 = vld [vmem:[%s3] sm:$0xff]
  %v123 = vld [vmem:[%s3 + $0x8] sm:$0xff]
  %v124 = vld [vmem:[%s3 + $0x10] sm:$0xff]
  %v125 = vld [vmem:[%s3 + $0x18] sm:$0xff]
  %v126 = vld [vmem:[%s3 + $0x20] sm:$0xff]
  %v127 = vld [vmem:[%s3 + $0x28] sm:$0xff]
  %v128 = vld [vmem:[%s3 + $0x30] sm:$0xff]
  %v129 = vld [vmem:[%s3 + $0x38] sm:$0xff]
  %v130 = vld [vmem:[%s3 + $0x40] sm:$0xff]
  %v131 = vld [vmem:[%s3 + $0x48] sm:$0xff]
  %v132 = vld [vmem:[%s3 + $0x50] sm:$0xff]
  %v133 = vld [vmem:[%s3 + $0x58] sm:$0xff]
  %v134 = vld [vmem:[%s3 + $0x60] sm:$0xff]
  %v135 = vld [vmem:[%s3 + $0x68] sm:$0xff]
  %v136 = vld [vmem:[%s3 + $0x70] sm:$0xff]
  %v137 = vld [vmem:[%s3 + $0x78] sm:$0xff]
  %v138 = vld [vmem:[%s4] sm:$0x1]
  %v140 = vperm.slane %v138, 0
  %142 = vmatpush.msra.mxu0 %v137
  %143 = vmatpush.msra.mxu0 %v136
  %144 = vmatpush.msra.mxu0 %v135
  %145 = vmatpush.msra.mxu0 %v134
  %146 = vmatpush.msra.mxu0 %v133
  %147 = vmatpush.msra.mxu0 %v132
  %148 = vmatpush.msra.mxu0 %v131
  %149 = vmatpush.msra.mxu0 %v130
  %150 = vmatpush.msra.mxu0 %v129
  %151 = vmatpush.msra.mxu0 %v128
  %152 = vmatpush.msra.mxu0 %v127
  %153 = vmatpush.msra.mxu0 %v126
  %154 = vmatpush.msra.mxu0 %v125
  %155 = vmatpush.msra.mxu0 %v124
  %156 = vmatpush.msra.mxu0 %v123
  %157 = vmatpush.msra.mxu0 %v122
  %158 = vmatmul.f32.gmra.mxu0 %v113
  %v159 = vpop.f32.mrf.mxu0
  %v160 = vadd.f32 %v140, %v159
  %161 = vmatmul.f32.gmra.mxu0 %v114
  %v162 = vpop.f32.mrf.mxu0
  %v163 = vadd.f32 %v140, %v162
  %164 = vmatmul.f32.gmra.mxu0 %v115
  %v165 = vpop.f32.mrf.mxu0
  %v166 = vadd.f32 %v140, %v165
  %167 = vmatmul.f32.gmra.mxu0 %v116
  %v168 = vpop.f32.mrf.mxu0
  %v169 = vadd.f32 %v140, %v168
  %170 = vmatmul.f32.gmra.mxu0 %v117
  %v171 = vpop.f32.mrf.mxu0
  %v172 = vadd.f32 %v140, %v171
  %173 = vmatmul.f32.gmra.mxu0 %v118
  %v174 = vpop.f32.mrf.mxu0
  %v175 = vadd.f32 %v140, %v174
  %176 = vmatmul.f32.gmra.mxu0 %v119
  %v177 = vpop.f32.mrf.mxu0
  %v178 = vadd.f32 %v140, %v177
  %179 = vmatmul.f32.gmra.mxu0 %v120
  %v180 = vpop.f32.mrf.mxu0
  %v181 = vadd.f32 %v140, %v180
  %182 = vmatmul.f32.gmra.mxu0 %v121
  %v183 = vpop.f32.mrf.mxu0
  %v184 = vadd.f32 %v140, %v183
  %185 = vdwg.mxu0
  %v186 = vmax.f32 %v160, 0.0
  %v187 = vmax.f32 %v163, 0.0
  %v188 = vmax.f32 %v166, 0.0
  %v189 = vmax.f32 %v169, 0.0
  %v190 = vmax.f32 %v172, 0.0
  %v191 = vmax.f32 %v175, 0.0
  %v192 = vmax.f32 %v178, 0.0
  %v193 = vmax.f32 %v181, 0.0
  %v194 = vmax.f32 %v184, 0.0
  %v195 = vld [vmem:[%s5] sm:$0xff]
  %v196 = vld [vmem:[%s5 + $0x8] sm:$0xff]
  %v197 = vld [vmem:[%s5 + $0x10] sm:$0xff]
  %v198 = vld [vmem:[%s5 + $0x18] sm:$0xff]
  %v199 = vld [vmem:[%s5 + $0x20] sm:$0xff]
  %v200 = vld [vmem:[%s5 + $0x28] sm:$0xff]
  %v201 = vld [vmem:[%s5 + $0x30] sm:$0xff]
  %v202 = vld [vmem:[%s5 + $0x38] sm:$0xff]
  %v203 = vld [vmem:[%s5 + $0x40] sm:$0xff]
  %v204 = vld [vmem:[%s5 + $0x48] sm:$0xff]
  %v205 = vld [vmem:[%s5 + $0x50] sm:$0xff]
  %v206 = vld [vmem:[%s5 + $0x58] sm:$0xff]
  %v207 = vld [vmem:[%s5 + $0x60] sm:$0xff]
  %v208 = vld [vmem:[%s5 + $0x68] sm:$0xff]
  %v209 = vld [vmem:[%s5 + $0x70] sm:$0xff]
  %v210 = vld [vmem:[%s5 + $0x78] sm:$0xff]
  %v211 = vld [vmem:[%s6] sm:$0x1]
  %v213 = vperm.slane %v211, 0
  %215 = vmatpush.msra.mxu0 %v210
  %216 = vmatpush.msra.mxu0 %v209
  %217 = vmatpush.msra.mxu0 %v208
  %218 = vmatpush.msra.mxu0 %v207
  %219 = vmatpush.msra.mxu0 %v206
  %220 = vmatpush.msra.mxu0 %v205
  %221 = vmatpush.msra.mxu0 %v204
  %222 = vmatpush.msra.mxu0 %v203
  %223 = vmatpush.msra.mxu0 %v202
  %224 = vmatpush.msra.mxu0 %v201
  %225 = vmatpush.msra.mxu0 %v200
  %226 = vmatpush.msra.mxu0 %v199
  %227 = vmatpush.msra.mxu0 %v198
  %228 = vmatpush.msra.mxu0 %v197
  %229 = vmatpush.msra.mxu0 %v196
  %230 = vmatpush.msra.mxu0 %v195
  %231 = vmatmul.f32.gmra.mxu0 %v186
  %v232 = vpop.f32.mrf.mxu0
  %v233 = vadd.f32 %v213, %v232
  %234 = vmatmul.f32.gmra.mxu0 %v187
  %v235 = vpop.f32.mrf.mxu0
  %v236 = vadd.f32 %v213, %v235
  %237 = vmatmul.f32.gmra.mxu0 %v188
  %v238 = vpop.f32.mrf.mxu0
  %v239 = vadd.f32 %v213, %v238
  %240 = vmatmul.f32.gmra.mxu0 %v189
  %v241 = vpop.f32.mrf.mxu0
  %v242 = vadd.f32 %v213, %v241
  %243 = vmatmul.f32.gmra.mxu0 %v190
  %v244 = vpop.f32.mrf.mxu0
  %v245 = vadd.f32 %v213, %v244
  %246 = vmatmul.f32.gmra.mxu0 %v191
  %v247 = vpop.f32.mrf.mxu0
  %v248 = vadd.f32 %v213, %v247
  %249 = vmatmul.f32.gmra.mxu0 %v192
  %v250 = vpop.f32.mrf.mxu0
  %v251 = vadd.f32 %v213, %v250
  %252 = vmatmul.f32.gmra.mxu0 %v193
  %v253 = vpop.f32.mrf.mxu0
  %v254 = vadd.f32 %v213, %v253
  %255 = vmatmul.f32.gmra.mxu0 %v194
  %v256 = vpop.f32.mrf.mxu0
  %v257 = vadd.f32 %v213, %v256
  %258 = vdwg.mxu0
  %259 = vst [vmem:[%s7] sm:$0xff] %v233
  %260 = vst [vmem:[%s7 + $0x8] sm:$0xff] %v236
  %261 = vst [vmem:[%s7 + $0x10] sm:$0xff] %v239
  %262 = vst [vmem:[%s7 + $0x18] sm:$0xff] %v242
  %263 = vst [vmem:[%s7 + $0x20] sm:$0xff] %v245
  %264 = vst [vmem:[%s7 + $0x28] sm:$0xff] %v248
  %265 = vst [vmem:[%s7 + $0x30] sm:$0xff] %v251
  %266 = vst [vmem:[%s7 + $0x38] sm:$0xff] %v254
  %267 = vst [vmem:[%s7 + $0x40] sm:$0xff] %v257
  // Predicated region
  $region30: #{mlp_decoder.1} parent=0 // pred_check
    _
  $region31: #{mlp_decoder.1} parent=0 // pred_check_branch
    %269 = sbr.rel (0) target = $region33
  $region32: #{mlp_decoder.1} parent=0 // pred_region
    _
  $region33: #{mlp_decoder.1} parent=0 // pred_fallthru
    _
  // Predicated region
  $region34: #{mlp_decoder.1} parent=0 // pred_check
    _
  $region35: #{mlp_decoder.1} parent=0 // pred_check_branch
    %271 = sbr.rel (0) target = $region37
  $region36: #{mlp_decoder.1} parent=0 // pred_region
    _
  $region37: #{mlp_decoder.1} parent=0 // pred_fallthru
    _

</llo_original>
